<compile_context>
chip_gen: v6e
topology: v6e:2x2x1
jax: 0.10.0
libtpu: 0.0.40
codegen_flags: <defaults>
</compile_context>

<pallas_src>
import functools

import jax
import jax.numpy as jnp
from jax import lax
from jax.experimental import pallas as pl
from jax.experimental.pallas import tpu as pltpu


def _choose_tile(n, preferred, step=128):
    """Largest tile <= preferred that divides n, preferring multiples of `step` (lane width)."""
    if n <= preferred:
        return n
    for s in (step, 8):
        t = (preferred // s) * s
        while t >= s:
            if n % t == 0:
                return t
            t -= s
    return n


def _compiler_params(semantics, est_vmem_bytes):
    # Size the scoped-VMEM request from actual usage (2x for double buffering slack) and keep
    # it well under v7x's 64 MiB physical VMEM (also valid on v5e/v6e).
    limit = int(min(max(2 * est_vmem_bytes + (8 << 20), 16 << 20), 48 << 20))
    return pltpu.CompilerParams(dimension_semantics=tuple(semantics),
                                vmem_limit_bytes=limit)


# ---------------------------------------------------------------------------
# Kernel 1: QKV projection, per-head grid (no relayout; scale folded into wq)
# ---------------------------------------------------------------------------
def _qkv_kernel(x_ref, wq_ref, wk_ref, wv_ref, q_ref, k_ref, v_ref):
    x = x_ref[0]                                   # (tn, dim)      bf16
    q_ref[0, 0] = jnp.dot(x, wq_ref[0], preferred_element_type=jnp.float32).astype(q_ref.dtype)
    k_ref[0, 0] = jnp.dot(x, wk_ref[0], preferred_element_type=jnp.float32).astype(k_ref.dtype)
    v_ref[0, 0] = jnp.dot(x, wv_ref[0], preferred_element_type=jnp.float32).astype(v_ref.dtype)


def _qkv_project(x_bf, wq_h, wk_h, wv_h, *, heads, dim_head, tn):
    b, n, dim = x_bf.shape
    out_sds = jax.ShapeDtypeStruct((b, heads, n, dim_head), jnp.bfloat16)
    w_spec = pl.BlockSpec((1, dim, dim_head), lambda bi, ti, hi: (hi, 0, 0))
    out_spec = pl.BlockSpec((1, 1, tn, dim_head), lambda bi, ti, hi: (bi, hi, ti, 0))
    est = 2 * (tn * dim + 3 * dim * dim_head + 3 * tn * dim_head)  # bf16 bytes
    return pl.pallas_call(
        _qkv_kernel,
        out_shape=(out_sds, out_sds, out_sds),
        grid_spec=pltpu.PrefetchScalarGridSpec(
            num_scalar_prefetch=0,
            # heads innermost: the x tile stays resident across the head loop (unchanged
            # block index), only the small per-head weight blocks stream.
            grid=(b, n // tn, heads),
            in_specs=[
                pl.BlockSpec((1, tn, dim), lambda bi, ti, hi: (bi, ti, 0)),
                w_spec, w_spec, w_spec,
            ],
            out_specs=[out_spec, out_spec, out_spec],
        ),
        compiler_params=_compiler_params(("parallel", "parallel", "parallel"), est),
    )(x_bf, wq_h, wk_h, wv_h)


# ---------------------------------------------------------------------------
# Kernel 2: flash attention (resident K/V per head when it fits; online softmax)
# ---------------------------------------------------------------------------
def _flash_kernel(q_ref, k_ref, v_ref, o_ref, m_sc, l_sc, acc_sc, *, tk, n_chunks):
    ki = pl.program_id(3)

    @pl.when(ki == 0)
    def _():
        m_sc[...] = jnp.full(m_sc.shape, -jnp.inf, m_sc.dtype)
        l_sc[...] = jnp.zeros(l_sc.shape, l_sc.dtype)
        acc_sc[...] = jnp.zeros(acc_sc.shape, acc_sc.dtype)

    q = q_ref[0, 0]                                     # (tq, D) bf16, scale pre-folded

    def step(start):
        k = k_ref[0, 0, pl.ds(start, tk), :]            # (tk, D) bf16
        v = v_ref[0, 0, pl.ds(start, tk), :]            # (tk, D) bf16
        # s = q @ k^T  (bf16 operands, f32 accumulation on the MXU)
        s = lax.dot_general(q, k, (((1,), (1,)), ((), ())),
                            preferred_element_type=jnp.float32)          # (tq, tk) f32
        m_prev = m_sc[...]                                                # (tq, 128)
        m_new = jnp.maximum(m_prev, jnp.max(s, axis=-1, keepdims=True))   # (tq, 128)
        alpha = jnp.exp(m_prev - m_new)                                   # (tq, 128)
        p = jnp.exp(s - m_new[:, 0:1])                                    # (tq, tk)  f32
        l_sc[...] = alpha * l_sc[...] + jnp.sum(p, axis=-1, keepdims=True)
        acc_sc[...] = alpha[:, 0:1] * acc_sc[...] + jnp.dot(
            p.astype(v.dtype), v, preferred_element_type=jnp.float32)     # (tq, D) f32
        m_sc[...] = m_new

    if n_chunks <= 8:
        for ci in range(n_chunks):                      # static, fully unrolled
            step(ci * tk)
    else:
        def body(ci, carry):
            step(pl.multiple_of(ci * tk, tk))
            return carry
        lax.fori_loop(0, n_chunks, body, 0)

    @pl.when(ki == pl.num_programs(3) - 1)
    def _():
        inv = pl.reciprocal(l_sc[:, 0:1], approx=True)                    # EUP slot
        o_ref[0, 0] = (acc_sc[...] * inv).astype(o_ref.dtype)


def _flash_attention(q, k, v, *, tq, tk):
    b, h, n, d = q.shape
    # Keep a whole head of K/V resident in VMEM across q tiles when it fits comfortably;
    # otherwise stream kv blocks of size tk through the grid (kv axis last, "arbitrary").
    kv_resident_bytes = 4 * n * d * 2                   # K+V, double-buffered, bf16
    kv_block = n if kv_resident_bytes <= (16 << 20) else tk
    n_chunks = kv_block // tk
    nkv = n // kv_block
    est = 2 * 2 * (tq * d + 2 * kv_block * d + tq * d) + tq * (2 * 128 + d) * 4
    kernel = functools.partial(_flash_kernel, tk=tk, n_chunks=n_chunks)
    return pl.pallas_call(
        kernel,
        out_shape=jax.ShapeDtypeStruct((b, h, n, d), jnp.bfloat16),
        grid_spec=pltpu.PrefetchScalarGridSpec(
            num_scalar_prefetch=0,
            grid=(b, h, n // tq, nkv),
            in_specs=[
                pl.BlockSpec((1, 1, tq, d), lambda bi, hi, qi, ki: (bi, hi, qi, 0)),
                pl.BlockSpec((1, 1, kv_block, d), lambda bi, hi, qi, ki: (bi, hi, ki, 0)),
                pl.BlockSpec((1, 1, kv_block, d), lambda bi, hi, qi, ki: (bi, hi, ki, 0)),
            ],
            out_specs=pl.BlockSpec((1, 1, tq, d), lambda bi, hi, qi, ki: (bi, hi, qi, 0)),
            scratch_shapes=[
                pltpu.VMEM((tq, 128), jnp.float32),     # running max (lane-dense stats)
                pltpu.VMEM((tq, 128), jnp.float32),     # running denominator
                pltpu.VMEM((tq, d), jnp.float32),       # output accumulator
            ],
        ),
        compiler_params=_compiler_params(
            ("parallel", "parallel", "parallel", "arbitrary"), est),
    )(q, k, v)


# ---------------------------------------------------------------------------
# Kernel 3: output projection — single K=inner matmul per tile + bias
# ---------------------------------------------------------------------------
def _out_proj_kernel(o_ref, w_ref, b_ref, y_ref):
    o = o_ref[0]                                        # (H, tn, D)  bf16
    h, tn, d = o.shape
    # one relayout per tile: (H, tn, D) -> (tn, H*D); then one full-depth MXU contraction.
    o2 = jnp.transpose(o, (1, 0, 2)).reshape(tn, h * d)
    y = jnp.dot(o2, w_ref[...], preferred_element_type=jnp.float32)      # (tn, dim) f32
    y_ref[0] = (y + b_ref[...].astype(jnp.float32)).astype(y_ref.dtype)


def _out_project(o, w_out, bias_2d, out_dtype, *, tn):
    b, h, n, d = o.shape
    inner, dim = w_out.shape
    est = 2 * 2 * (h * tn * d + inner * dim + tn * dim) + tn * inner * 2
    return pl.pallas_call(
        _out_proj_kernel,
        out_shape=jax.ShapeDtypeStruct((b, n, dim), out_dtype),
        grid_spec=pltpu.PrefetchScalarGridSpec(
            num_scalar_prefetch=0,
            grid=(b, n // tn),
            in_specs=[
                pl.BlockSpec((1, h, tn, d), lambda bi, ti: (bi, 0, ti, 0)),
                pl.BlockSpec((inner, dim), lambda bi, ti: (0, 0)),
                pl.BlockSpec((1, dim), lambda bi, ti: (0, 0)),
            ],
            out_specs=pl.BlockSpec((1, tn, dim), lambda bi, ti: (bi, ti, 0)),
        ),
        compiler_params=_compiler_params(("parallel", "parallel"), est),
    )(o, w_out, bias_2d)


# ---------------------------------------------------------------------------
# Top-level forward
# ---------------------------------------------------------------------------
def attention_forward(x, w_qkv, w_out, b_out, *, heads, dim_head,
                      q_tile=512, kv_tile=512, row_tile=512):
    """x: (B, N, dim);  w_qkv: (dim, 3*inner);  w_out: (inner, dim);  b_out: (dim,).

    Weights are stored transposed relative to torch.nn.Linear (y = x @ W)."""
    b, n, dim = x.shape
    inner = heads * dim_head
    assert w_qkv.shape == (dim, 3 * inner)
    scale = dim_head ** (-0.5)

    tn = _choose_tile(n, row_tile)
    tq = _choose_tile(n, q_tile)
    tk = _choose_tile(n, kv_tile)

    # bf16 MXU operands; all in-kernel accumulation is f32.
    x_bf = x.astype(jnp.bfloat16)

    def per_head(w):   # (dim, inner) -> (heads, dim, dim_head)
        return jnp.transpose(w.reshape(dim, heads, dim_head), (1, 0, 2)).astype(jnp.bfloat16)

    wq_h = per_head(w_qkv[:, 0 * inner:1 * inner] * scale)   # softmax scale folded into wq
    wk_h = per_head(w_qkv[:, 1 * inner:2 * inner])
    wv_h = per_head(w_qkv[:, 2 * inner:3 * inner])

    q, k, v = _qkv_project(x_bf, wq_h, wk_h, wv_h, heads=heads, dim_head=dim_head, tn=tn)
    o = _flash_attention(q, k, v, tq=tq, tk=tk)               # (B, H, N, D) bf16

    if heads == 1 and dim_head == dim:
        # project_out is False in the PyTorch module -> to_out = nn.Identity()
        return o[:, 0, :, :].astype(x.dtype)

    assert w_out.shape == (inner, dim)
    return _out_project(o, w_out.astype(jnp.bfloat16),
                        b_out.reshape(1, dim).astype(jnp.float32), x.dtype, tn=tn)


def attention_reference(x, w_qkv, w_out, b_out, *, heads, dim_head):
    """Plain-JAX f32 reference mirroring the PyTorch forward."""
    b, n, dim = x.shape
    inner = heads * dim_head
    scale = dim_head ** (-0.5)
    qkv = x @ w_qkv
    q, k, v = jnp.split(qkv, 3, axis=-1)

    def to_heads(t):
        return jnp.transpose(t.reshape(b, n, heads, dim_head), (0, 2, 1, 3))

    q, k, v = to_heads(q), to_heads(k), to_heads(v)
    dots = jnp.einsum("bhnd,bhmd->bhnm", q, k) * scale
    attn = jax.nn.softmax(dots, axis=-1)
    out = jnp.einsum("bhnm,bhmd->bhnd", attn, v)
    out = jnp.transpose(out, (0, 2, 1, 3)).reshape(b, n, inner)
    if heads == 1 and dim_head == dim:
        return out
    return out @ w_out + b_out


def _run_case(key, b, n, dim, heads, dim_head, atol, rtol):
    inner = heads * dim_head
    kx, kq, ko, kb = jax.random.split(key, 4)
    x = jax.random.normal(kx, (b, n, dim), dtype=jnp.float32)
    w_qkv = jax.random.normal(kq, (dim, 3 * inner), dtype=jnp.float32) * 0.05
    w_out = jax.random.normal(ko, (inner, dim), dtype=jnp.float32) * 0.05
    b_out = jax.random.normal(kb, (dim,), dtype=jnp.float32) * 0.05   # nonzero to_out bias

    y = attention_forward(x, w_qkv, w_out, b_out, heads=heads, dim_head=dim_head)
    y = jax.block_until_ready(y)
    y_ref = attention_reference(x, w_qkv, w_out, b_out, heads=heads, dim_head=dim_head)
    assert y.shape == (b, n, dim)
    max_diff = jnp.max(jnp.abs(y - y_ref))
    assert jnp.allclose(y, y_ref, atol=atol, rtol=rtol), f"mismatch vs reference: {max_diff}"
    return y


if __name__ == "__main__":
    key = jax.random.PRNGKey(0)
    k1, k2 = jax.random.split(key)

    # Small shapes consistent with the module (bf16 MXU operands -> relaxed tolerance vs f32 ref).
    _run_case(k1, b=2, n=8, dim=32, heads=4, dim_head=16, atol=3e-2, rtol=3e-2)
    # Slightly larger smoke test exercising multiple q tiles and the in-kernel kv-chunk loop.
    _run_case(k2, b=1, n=1024, dim=128, heads=4, dim_head=64, atol=5e-2, rtol=5e-2)

    print("KERNEL_OK")
</pallas_src>

<mosaic_0001>
module attributes {stable_mosaic.version = 11 : i64} {
  func.func @_qkv_kernel(%arg0: i32, %arg1: i32, %arg2: i32, %arg3: memref<1x8x32xbf16, #tpu.memory_space<vmem>>, %arg4: memref<1x32x16xbf16, #tpu.memory_space<vmem>>, %arg5: memref<1x32x16xbf16, #tpu.memory_space<vmem>>, %arg6: memref<1x32x16xbf16, #tpu.memory_space<vmem>>, %arg7: memref<1x1x8x16xbf16, #tpu.memory_space<vmem>>, %arg8: memref<1x1x8x16xbf16, #tpu.memory_space<vmem>>, %arg9: memref<1x1x8x16xbf16, #tpu.memory_space<vmem>>) attributes {dimension_semantics = [#tpu.dimension_semantics<parallel>, #tpu.dimension_semantics<parallel>, #tpu.dimension_semantics<parallel>], iteration_bounds = array<i64: 2, 1, 4>, scalar_prefetch = 0 : i64, scratch_operands = 0 : i64, tpu.core_type = #tpu.core_type<tc>, window_params = [{transform_indices = @transform_0, window_bounds = array<i64: 1, 8, 32>}, {transform_indices = @transform_1, window_bounds = array<i64: 1, 32, 16>}, {transform_indices = @transform_2, window_bounds = array<i64: 1, 32, 16>}, {transform_indices = @transform_3, window_bounds = array<i64: 1, 32, 16>}, {transform_indices = @transform_4, window_bounds = array<i64: 1, 1, 8, 16>}, {transform_indices = @transform_5, window_bounds = array<i64: 1, 1, 8, 16>}, {transform_indices = @transform_6, window_bounds = array<i64: 1, 1, 8, 16>}]} {
    %c0 = arith.constant 0 : index
    %c0_0 = arith.constant 0 : index
    %c0_1 = arith.constant 0 : index
    %0 = vector.load %arg3[%c0, %c0_0, %c0_1] : memref<1x8x32xbf16, #tpu.memory_space<vmem>>, vector<1x8x32xbf16>
    %1 = vector.shape_cast %0 : vector<1x8x32xbf16> to vector<8x32xbf16>
    %c0_2 = arith.constant 0 : index
    %c0_3 = arith.constant 0 : index
    %c0_4 = arith.constant 0 : index
    %2 = vector.load %arg4[%c0_2, %c0_3, %c0_4] : memref<1x32x16xbf16, #tpu.memory_space<vmem>>, vector<1x32x16xbf16>
    %3 = vector.shape_cast %2 : vector<1x32x16xbf16> to vector<32x16xbf16>
    %cst = arith.constant dense<0.000000e+00> : vector<8x16xf32>
    %4 = tpu.matmul %1, %3, %cst {dimension_numbers = #tpu.dot_dimension_numbers<[1], [0], [0], [1], [0, 0, 1, 1], [], []>} : vector<8x32xbf16>, vector<32x16xbf16>, vector<8x16xf32> -> vector<8x16xf32>
    %5 = arith.truncf %4 : vector<8x16xf32> to vector<8x16xbf16>
    %c0_5 = arith.constant 0 : index
    %c0_6 = arith.constant 0 : index
    %c0_7 = arith.constant 0 : index
    %c0_8 = arith.constant 0 : index
    %6 = vector.load %arg7[%c0_5, %c0_6, %c0_7, %c0_8] : memref<1x1x8x16xbf16, #tpu.memory_space<vmem>>, vector<1x1x8x16xbf16>
    %7 = vector.shape_cast %6 : vector<1x1x8x16xbf16> to vector<8x16xbf16>
    %8 = vector.shape_cast %5 : vector<8x16xbf16> to vector<1x1x8x16xbf16>
    tpu.vector_store %arg7[%c0_5, %c0_6, %c0_7, %c0_8], %8 {strides = array<i32>} : memref<1x1x8x16xbf16, #tpu.memory_space<vmem>>, vector<1x1x8x16xbf16>,
    %c0_9 = arith.constant 0 : index
    %c0_10 = arith.constant 0 : index
    %c0_11 = arith.constant 0 : index
    %9 = vector.load %arg5[%c0_9, %c0_10, %c0_11] : memref<1x32x16xbf16, #tpu.memory_space<vmem>>, vector<1x32x16xbf16>
    %10 = vector.shape_cast %9 : vector<1x32x16xbf16> to vector<32x16xbf16>
    %cst_12 = arith.constant dense<0.000000e+00> : vector<8x16xf32>
    %11 = tpu.matmul %1, %10, %cst_12 {dimension_numbers = #tpu.dot_dimension_numbers<[1], [0], [0], [1], [0, 0, 1, 1], [], []>} : vector<8x32xbf16>, vector<32x16xbf16>, vector<8x16xf32> -> vector<8x16xf32>
    %12 = arith.truncf %11 : vector<8x16xf32> to vector<8x16xbf16>
    %c0_13 = arith.constant 0 : index
    %c0_14 = arith.constant 0 : index
    %c0_15 = arith.constant 0 : index
    %c0_16 = arith.constant 0 : index
    %13 = vector.load %arg8[%c0_13, %c0_14, %c0_15, %c0_16] : memref<1x1x8x16xbf16, #tpu.memory_space<vmem>>, vector<1x1x8x16xbf16>
    %14 = vector.shape_cast %13 : vector<1x1x8x16xbf16> to vector<8x16xbf16>
    %15 = vector.shape_cast %12 : vector<8x16xbf16> to vector<1x1x8x16xbf16>
    tpu.vector_store %arg8[%c0_13, %c0_14, %c0_15, %c0_16], %15 {strides = array<i32>} : memref<1x1x8x16xbf16, #tpu.memory_space<vmem>>, vector<1x1x8x16xbf16>,
    %c0_17 = arith.constant 0 : index
    %c0_18 = arith.constant 0 : index
    %c0_19 = arith.constant 0 : index
    %16 = vector.load %arg6[%c0_17, %c0_18, %c0_19] : memref<1x32x16xbf16, #tpu.memory_space<vmem>>, vector<1x32x16xbf16>
    %17 = vector.shape_cast %16 : vector<1x32x16xbf16> to vector<32x16xbf16>
    %cst_20 = arith.constant dense<0.000000e+00> : vector<8x16xf32>
    %18 = tpu.matmul %1, %17, %cst_20 {dimension_numbers = #tpu.dot_dimension_numbers<[1], [0], [0], [1], [0, 0, 1, 1], [], []>} : vector<8x32xbf16>, vector<32x16xbf16>, vector<8x16xf32> -> vector<8x16xf32>
    %19 = arith.truncf %18 : vector<8x16xf32> to vector<8x16xbf16>
    %c0_21 = arith.constant 0 : index
    %c0_22 = arith.constant 0 : index
    %c0_23 = arith.constant 0 : index
    %c0_24 = arith.constant 0 : index
    %20 = vector.load %arg9[%c0_21, %c0_22, %c0_23, %c0_24] : memref<1x1x8x16xbf16, #tpu.memory_space<vmem>>, vector<1x1x8x16xbf16>
    %21 = vector.shape_cast %20 : vector<1x1x8x16xbf16> to vector<8x16xbf16>
    %22 = vector.shape_cast %19 : vector<8x16xbf16> to vector<1x1x8x16xbf16>
    tpu.vector_store %arg9[%c0_21, %c0_22, %c0_23, %c0_24], %22 {strides = array<i32>} : memref<1x1x8x16xbf16, #tpu.memory_space<vmem>>, vector<1x1x8x16xbf16>,
    return
  }
  func.func @transform_0(%arg0: i32, %arg1: i32, %arg2: i32) -> (i32, i32, i32) {
    %c0_i32 = arith.constant 0 : i32
    %c0_i32_0 = arith.constant 0 : i32
    return %arg0, %arg1, %c0_i32 : i32, i32, i32
  }
  func.func @transform_1(%arg0: i32, %arg1: i32, %arg2: i32) -> (i32, i32, i32) {
    %c0_i32 = arith.constant 0 : i32
    %c0_i32_0 = arith.constant 0 : i32
    %c0_i32_1 = arith.constant 0 : i32
    return %arg2, %c0_i32, %c0_i32_0 : i32, i32, i32
  }
  func.func @transform_2(%arg0: i32, %arg1: i32, %arg2: i32) -> (i32, i32, i32) {
    %c0_i32 = arith.constant 0 : i32
    %c0_i32_0 = arith.constant 0 : i32
    %c0_i32_1 = arith.constant 0 : i32
    return %arg2, %c0_i32, %c0_i32_0 : i32, i32, i32
  }
  func.func @transform_3(%arg0: i32, %arg1: i32, %arg2: i32) -> (i32, i32, i32) {
    %c0_i32 = arith.constant 0 : i32
    %c0_i32_0 = arith.constant 0 : i32
    %c0_i32_1 = arith.constant 0 : i32
    return %arg2, %c0_i32, %c0_i32_0 : i32, i32, i32
  }
  func.func @transform_4(%arg0: i32, %arg1: i32, %arg2: i32) -> (i32, i32, i32, i32) {
    %c0_i32 = arith.constant 0 : i32
    %c0_i32_0 = arith.constant 0 : i32
    return %arg0, %arg2, %arg1, %c0_i32 : i32, i32, i32, i32
  }
  func.func @transform_5(%arg0: i32, %arg1: i32, %arg2: i32) -> (i32, i32, i32, i32) {
    %c0_i32 = arith.constant 0 : i32
    %c0_i32_0 = arith.constant 0 : i32
    return %arg0, %arg2, %arg1, %c0_i32 : i32, i32, i32, i32
  }
  func.func @transform_6(%arg0: i32, %arg1: i32, %arg2: i32) -> (i32, i32, i32, i32) {
    %c0_i32 = arith.constant 0 : i32
    %c0_i32_0 = arith.constant 0 : i32
    return %arg0, %arg2, %arg1, %c0_i32 : i32, i32, i32, i32
  }
}

</mosaic_0001>

<llo_original>
// kernel: tpu_custom_call.1
$region0: #{tpu_custom_call.1}
  #allocation0 [shape = 'u32[]', space=smem, size = 0x4, offset = 0x4, fixed_abs, tag = 'smem constant byte address 0x4 - core index']
  #allocation1 [shape = 'u32[144,128]{1,0:T(1,128)}', space=vmem, size = 0x12000, scoped, tag = 'internal scratch']
  %s0 = inlined_call_operand.vmem [shape: bf16[2,8,32], index: 0, kind: input, shape index: {}]
  %s1 = inlined_call_operand.vmem [shape: bf16[4,32,16], index: 1, kind: input, shape index: {}]
  %s2 = inlined_call_operand.vmem [shape: bf16[4,32,16], index: 2, kind: input, shape index: {}]
  %s3 = inlined_call_operand.vmem [shape: bf16[4,32,16], index: 3, kind: input, shape index: {}]
  %s4 = inlined_call_operand.hbm [shape: bf16[2,4,8,16], index: 4, kind: output, shape index: {0}]
  %s5 = inlined_call_operand.hbm [shape: bf16[2,4,8,16], index: 5, kind: output, shape index: {1}]
  %s6 = inlined_call_operand.hbm [shape: bf16[2,4,8,16], index: 6, kind: output, shape index: {2}]
  %7 = xla_tuple %s4, %s5, %s6
  %s8 = sld [smem:[#allocation0]]
  $region65: #{tpu_custom_call.1} parent=0
    _
  %s10 = ssub.s32 1, %s8
  %s11 = scalar_select 0, %s10, %s8
  $region1: #{tpu_custom_call.1} parent=0
    #allocation2 [shape = 'u8[4096]{0}', space=vmem, size = 0x1000, scoped, tag = 'output window, operand 0']
    #allocation3 [shape = 's32[2]{0}', space=sflag, size = 0x8, scoped, tag = 'scoped memory for tpu_custom_call.1']
    #allocation4 [shape = 'u8[4096]{0}', space=vmem, size = 0x1000, scoped, tag = 'output window, operand 1']
    #allocation5 [shape = 's32[2]{0}', space=sflag, size = 0x8, scoped, tag = 'scoped memory for tpu_custom_call.1']
    #allocation6 [shape = 'u8[4096]{0}', space=vmem, size = 0x1000, scoped, tag = 'output window, operand 2']
    %12 = vsyncpa [#allocation3], 0
    %s13 = scalar_lea.sflag [#allocation3], 1
    %14 = vsyncpa %s13, 0
    %15 = vsyncpa [#allocation5], 0
    %s16 = scalar_lea.sflag [#allocation5], 1
    %17 = vsyncpa %s16, 0
    loop: start=0, step=1, limit=10
    $region2: #{tpu_custom_call.1} parent=1 // loop_pre_header
      _
    $region3: #{tpu_custom_call.1} parent=1 // loop_header
      %s19 = sphi 0, %s23
      %p20 = scmp.ge.s32.totalorder %s19, 10
      %s26 = sphi 0, %s45
      %s27 = sphi 0, %s41
      %s28 = sphi 0, %s37
      %s29 = sphi 0, %s26
      %s30 = sphi 0, %s27
      %s31 = sphi 0, %s28
      %s32 = sphi 0, %s29
      %s33 = sphi 0, %s30
      %s34 = sphi 0, %s31
      %s50 = sphi 0, %s52
      %s53 = sphi 0, %s50
      %s54 = sphi 0, %s53
      %s70 = sphi 0, %s54
      %s76 = sphi 0, %s78
      %s79 = sphi 0, %s76
      %s80 = sphi 0, %s79
      %s96 = sphi 0, %s80
      %s102 = sphi 0, %s104
      %s105 = sphi 0, %s102
      %s106 = sphi 0, %s105
      %s122 = sphi 0, %s106
      %s128 = sphi 0, %s130
      %s131 = sphi 0, %s128
      %s132 = sphi 0, %s131
      %s148 = sphi 0, %s132
      %s158 = sphi 0, %s160
      %s161 = sphi 0, %s158
      %s162 = sphi 0, %s161
      %s178 = sphi 0, %s162
      %s188 = sphi 0, %s190
      %s191 = sphi 0, %s188
      %s192 = sphi 0, %s191
      %s208 = sphi 0, %s192
      %s218 = sphi 0, %s220
      %s221 = sphi 0, %s218
      %s222 = sphi 0, %s221
      %s238 = sphi 0, %s222
    $region4: #{tpu_custom_call.1} parent=1 // loop_header_branch
      %22 = sbr.rel (%p20) target = $region8
    $region5: #{tpu_custom_call.1} parent=1 // loop_body
      %s24 = ssub.s32 %s19, 1
      %s25 = ssub.s32 %s19, 2
      %s35 = sadd.s32 1, %s28
      %p36 = scmp.ge.s32.totalorder %s35, 4
      %s37 = scalar_select %p36, 0, %s35
      %s38 = sadd.s32 1, %s27
      %s39 = scalar_select %p36, %s38, %s27
      %p40 = scmp.ge.s32.totalorder %s39, 1
      %s41 = scalar_select %p40, 0, %s39
      %s42 = sadd.s32 1, %s26
      %s43 = scalar_select %p40, %s42, %s26
      %p44 = scmp.ge.s32.totalorder %s43, 2
      %s45 = scalar_select %p44, 0, %s43
      %s46 = ssub.s32 %s26, %s45
      %s47 = ssub.s32 %s27, %s41
      %s48 = sor.u32 %s46, %s47
      %p49 = scmp.eq.s32.totalorder %s48, 0
      %s51 = sadd.s32 %s50, 1
      %s52 = scalar_select %p49, %s50, %s51
      %p55 = pneg %p49
      %p56 = scmp.eq.s32.totalorder %s19, 7
      %p57 = por %p55, %p56
      %p58 = scmp.ne.s32.totalorder %s50, %s53
      %p59 = scmp.eq.s32.totalorder %s19, 0
      %p60 = por %p58, %p59
      %p61 = scmp.ne.s32.totalorder %s50, %s53
      %p62 = scmp.eq.s32.totalorder %s24, 7
      %p63 = por %p61, %p62
      %p64 = scmp.ne.s32.totalorder %s53, %s54
      %p65 = scmp.eq.s32.totalorder %s24, 0
      %p66 = por %p64, %p65
      %p67 = scmp.ne.s32.totalorder %s53, %s54
      %p68 = scmp.eq.s32.totalorder %s25, 7
      %p69 = por %p67, %p68
      %p71 = scmp.ne.s32.totalorder %s54, %s70
      %p72 = scmp.eq.s32.totalorder %s25, 0
      %p73 = por %p71, %p72
      %s74 = ssub.s32 %s28, %s37
      %p75 = scmp.eq.s32.totalorder %s74, 0
      %s77 = sadd.s32 %s76, 1
      %s78 = scalar_select %p75, %s76, %s77
      %p81 = pneg %p75
      %p82 = scmp.eq.s32.totalorder %s19, 7
      %p83 = por %p81, %p82
      %p84 = scmp.ne.s32.totalorder %s76, %s79
      %p85 = scmp.eq.s32.totalorder %s19, 0
      %p86 = por %p84, %p85
      %p87 = scmp.ne.s32.totalorder %s76, %s79
      %p88 = scmp.eq.s32.totalorder %s24, 7
      %p89 = por %p87, %p88
      %p90 = scmp.ne.s32.totalorder %s79, %s80
      %p91 = scmp.eq.s32.totalorder %s24, 0
      %p92 = por %p90, %p91
      %p93 = scmp.ne.s32.totalorder %s79, %s80
      %p94 = scmp.eq.s32.totalorder %s25, 7
      %p95 = por %p93, %p94
      %p97 = scmp.ne.s32.totalorder %s80, %s96
      %p98 = scmp.eq.s32.totalorder %s25, 0
      %p99 = por %p97, %p98
      %s100 = ssub.s32 %s28, %s37
      %p101 = scmp.eq.s32.totalorder %s100, 0
      %s103 = sadd.s32 %s102, 1
      %s104 = scalar_select %p101, %s102, %s103
      %p107 = pneg %p101
      %p108 = scmp.eq.s32.totalorder %s19, 7
      %p109 = por %p107, %p108
      %p110 = scmp.ne.s32.totalorder %s102, %s105
      %p111 = scmp.eq.s32.totalorder %s19, 0
      %p112 = por %p110, %p111
      %p113 = scmp.ne.s32.totalorder %s102, %s105
      %p114 = scmp.eq.s32.totalorder %s24, 7
      %p115 = por %p113, %p114
      %p116 = scmp.ne.s32.totalorder %s105, %s106
      %p117 = scmp.eq.s32.totalorder %s24, 0
      %p118 = por %p116, %p117
      %p119 = scmp.ne.s32.totalorder %s105, %s106
      %p120 = scmp.eq.s32.totalorder %s25, 7
      %p121 = por %p119, %p120
      %p123 = scmp.ne.s32.totalorder %s106, %s122
      %p124 = scmp.eq.s32.totalorder %s25, 0
      %p125 = por %p123, %p124
      %s126 = ssub.s32 %s28, %s37
      %p127 = scmp.eq.s32.totalorder %s126, 0
      %s129 = sadd.s32 %s128, 1
      %s130 = scalar_select %p127, %s128, %s129
      %p133 = pneg %p127
      %p134 = scmp.eq.s32.totalorder %s19, 7
      %p135 = por %p133, %p134
      %p136 = scmp.ne.s32.totalorder %s128, %s131
      %p137 = scmp.eq.s32.totalorder %s19, 0
      %p138 = por %p136, %p137
      %p139 = scmp.ne.s32.totalorder %s128, %s131
      %p140 = scmp.eq.s32.totalorder %s24, 7
      %p141 = por %p139, %p140
      %p142 = scmp.ne.s32.totalorder %s131, %s132
      %p143 = scmp.eq.s32.totalorder %s24, 0
      %p144 = por %p142, %p143
      %p145 = scmp.ne.s32.totalorder %s131, %s132
      %p146 = scmp.eq.s32.totalorder %s25, 7
      %p147 = por %p145, %p146
      %p149 = scmp.ne.s32.totalorder %s132, %s148
      %p150 = scmp.eq.s32.totalorder %s25, 0
      %p151 = por %p149, %p150
      %s152 = ssub.s32 %s26, %s45
      %s153 = ssub.s32 %s28, %s37
      %s154 = sor.u32 %s152, %s153
      %s155 = ssub.s32 %s27, %s41
      %s156 = sor.u32 %s154, %s155
      %p157 = scmp.eq.s32.totalorder %s156, 0
      %s159 = sadd.s32 %s158, 1
      %s160 = scalar_select %p157, %s158, %s159
      %p163 = pneg %p157
      %p164 = scmp.eq.s32.totalorder %s19, 7
      %p165 = por %p163, %p164
      %p166 = scmp.ne.s32.totalorder %s158, %s161
      %p167 = scmp.eq.s32.totalorder %s19, 0
      %p168 = por %p166, %p167
      %p169 = scmp.ne.s32.totalorder %s158, %s161
      %p170 = scmp.eq.s32.totalorder %s24, 7
      %p171 = por %p169, %p170
      %p172 = scmp.ne.s32.totalorder %s161, %s162
      %p173 = scmp.eq.s32.totalorder %s24, 0
      %p174 = por %p172, %p173
      %p175 = scmp.ne.s32.totalorder %s161, %s162
      %p176 = scmp.eq.s32.totalorder %s25, 7
      %p177 = por %p175, %p176
      %p179 = scmp.ne.s32.totalorder %s162, %s178
      %p180 = scmp.eq.s32.totalorder %s25, 0
      %p181 = por %p179, %p180
      %s182 = ssub.s32 %s26, %s45
      %s183 = ssub.s32 %s28, %s37
      %s184 = sor.u32 %s182, %s183
      %s185 = ssub.s32 %s27, %s41
      %s186 = sor.u32 %s184, %s185
      %p187 = scmp.eq.s32.totalorder %s186, 0
      %s189 = sadd.s32 %s188, 1
      %s190 = scalar_select %p187, %s188, %s189
      %p193 = pneg %p187
      %p194 = scmp.eq.s32.totalorder %s19, 7
      %p195 = por %p193, %p194
      %p196 = scmp.ne.s32.totalorder %s188, %s191
      %p197 = scmp.eq.s32.totalorder %s19, 0
      %p198 = por %p196, %p197
      %p199 = scmp.ne.s32.totalorder %s188, %s191
      %p200 = scmp.eq.s32.totalorder %s24, 7
      %p201 = por %p199, %p200
      %p202 = scmp.ne.s32.totalorder %s191, %s192
      %p203 = scmp.eq.s32.totalorder %s24, 0
      %p204 = por %p202, %p203
      %p205 = scmp.ne.s32.totalorder %s191, %s192
      %p206 = scmp.eq.s32.totalorder %s25, 7
      %p207 = por %p205, %p206
      %p209 = scmp.ne.s32.totalorder %s192, %s208
      %p210 = scmp.eq.s32.totalorder %s25, 0
      %p211 = por %p209, %p210
      %s212 = ssub.s32 %s26, %s45
      %s213 = ssub.s32 %s28, %s37
      %s214 = sor.u32 %s212, %s213
      %s215 = ssub.s32 %s27, %s41
      %s216 = sor.u32 %s214, %s215
      %p217 = scmp.eq.s32.totalorder %s216, 0
      %s219 = sadd.s32 %s218, 1
      %s220 = scalar_select %p217, %s218, %s219
      %p223 = pneg %p217
      %p224 = scmp.eq.s32.totalorder %s19, 7
      %p225 = por %p223, %p224
      %p226 = scmp.ne.s32.totalorder %s218, %s221
      %p227 = scmp.eq.s32.totalorder %s19, 0
      %p228 = por %p226, %p227
      %p229 = scmp.ne.s32.totalorder %s218, %s221
      %p230 = scmp.eq.s32.totalorder %s24, 7
      %p231 = por %p229, %p230
      %p232 = scmp.ne.s32.totalorder %s221, %s222
      %p233 = scmp.eq.s32.totalorder %s24, 0
      %p234 = por %p232, %p233
      %p235 = scmp.ne.s32.totalorder %s221, %s222
      %p236 = scmp.eq.s32.totalorder %s25, 7
      %p237 = por %p235, %p236
      %p239 = scmp.ne.s32.totalorder %s222, %s238
      %p240 = scmp.eq.s32.totalorder %s25, 0
      %p241 = por %p239, %p240
      %p242 = scmp.le.s32.totalorder 1, %s19
      %p243 = scmp.lt.s32.totalorder %s19, 9
      %p244 = pnand %p242, %p243
      %p245 = pneg %p244
      // Predicated region
      $region9: #{tpu_custom_call.1} parent=5 // pred_check
        _
      $region10: #{tpu_custom_call.1} parent=5 // pred_check_branch
        %247 = sbr.rel (%p244) target = $region12
      $region11: #{tpu_custom_call.1} parent=5 // pred_region
        %s248 = ssub.s32 %s19, 1
      $region12: #{tpu_custom_call.1} parent=5 // pred_fallthru
        _
      %p249 = scmp.lt.s32.totalorder %s19, 8
      // Predicated region
      $region13: #{tpu_custom_call.1} parent=5 // pred_check
        %p250 = pneg %p249
      $region14: #{tpu_custom_call.1} parent=5 // pred_check_branch
        %252 = sbr.rel (%p250) target = $region16
      $region15: #{tpu_custom_call.1} parent=5 // pred_region
        // Predicated region
        $region17: #{tpu_custom_call.1} parent=15 // pred_check
          %p253 = pneg %p60
        $region18: #{tpu_custom_call.1} parent=15 // pred_check_branch
          %255 = sbr.rel (%p253) target = $region20
        $region19: #{tpu_custom_call.1} parent=15 // pred_region
          %p256 = scmp.lt.s32.totalorder %s26, 1
          %s257 = scalar_select %p256, %s26, 1
          %p258 = scmp.lt.s32.totalorder %s27, 0
          %s259 = scalar_select %p258, %s27, 0
          %s260 = sadd.s32 %s259, %s257
          %s261 = smul.addr %s260, 4
          %s262 = scalar_lea.vmem %s0, %s261
        $region20: #{tpu_custom_call.1} parent=15 // pred_fallthru
          _
        // Predicated region
        $region21: #{tpu_custom_call.1} parent=15 // pred_check
          %p263 = pneg %p86
        $region22: #{tpu_custom_call.1} parent=15 // pred_check_branch
          %265 = sbr.rel (%p263) target = $region24
        $region23: #{tpu_custom_call.1} parent=15 // pred_region
          %p266 = scmp.lt.s32.totalorder %s28, 3
          %s267 = scalar_select %p266, %s28, 3
          %s268 = smul.addr %s267, 4
          %s269 = smul.addr %s268, 4
          %s270 = scalar_lea.vmem %s1, %s269
        $region24: #{tpu_custom_call.1} parent=15 // pred_fallthru
          _
        // Predicated region
        $region25: #{tpu_custom_call.1} parent=15 // pred_check
          %p271 = pneg %p112
        $region26: #{tpu_custom_call.1} parent=15 // pred_check_branch
          %273 = sbr.rel (%p271) target = $region28
        $region27: #{tpu_custom_call.1} parent=15 // pred_region
          %p274 = scmp.lt.s32.totalorder %s28, 3
          %s275 = scalar_select %p274, %s28, 3
          %s276 = smul.addr %s275, 4
          %s277 = smul.addr %s276, 4
          %s278 = scalar_lea.vmem %s2, %s277
        $region28: #{tpu_custom_call.1} parent=15 // pred_fallthru
          _
        // Predicated region
        $region29: #{tpu_custom_call.1} parent=15 // pred_check
          %p279 = pneg %p138
        $region30: #{tpu_custom_call.1} parent=15 // pred_check_branch
          %281 = sbr.rel (%p279) target = $region32
        $region31: #{tpu_custom_call.1} parent=15 // pred_region
          %p282 = scmp.lt.s32.totalorder %s28, 3
          %s283 = scalar_select %p282, %s28, 3
          %s284 = smul.addr %s283, 4
          %s285 = smul.addr %s284, 4
          %s286 = scalar_lea.vmem %s3, %s285
        $region32: #{tpu_custom_call.1} parent=15 // pred_fallthru
          _
      $region16: #{tpu_custom_call.1} parent=5 // pred_fallthru
        _
      %p287 = scmp.le.s32.totalorder 1, %s19
      %p288 = scmp.lt.s32.totalorder %s19, 9
      %p289 = pnand %p287, %p288
      %p290 = pneg %p289
      // Predicated region
      $region33: #{tpu_custom_call.1} parent=5 // pred_check
        _
      $region34: #{tpu_custom_call.1} parent=5 // pred_check_branch
        %292 = sbr.rel (%p289) target = $region36
      $region35: #{tpu_custom_call.1} parent=5 // pred_region
        %s293 = ssub.s32 %s19, 1
        %p294 = scmp.lt.s32.totalorder %s29, 1
        %s295 = scalar_select %p294, %s29, 1
        %p296 = scmp.lt.s32.totalorder %s30, 0
        %s297 = scalar_select %p296, %s30, 0
        %s298 = sadd.s32 %s297, %s295
        %s299 = smul.addr %s298, 4
        %s300 = scalar_lea.vmem %s0, %s299
        %p301 = pneg %p66
        %p302 = pneg %p63
        %p303 = scmp.lt.s32.totalorder %s31, 3
        %s304 = scalar_select %p303, %s31, 3
        %s305 = smul.addr %s304, 4
        %s306 = smul.addr %s305, 4
        %s307 = scalar_lea.vmem %s1, %s306
        %p308 = pneg %p92
        %p309 = pneg %p89
        %p310 = scmp.lt.s32.totalorder %s31, 3
        %s311 = scalar_select %p310, %s31, 3
        %s312 = smul.addr %s311, 4
        %s313 = smul.addr %s312, 4
        %s314 = scalar_lea.vmem %s2, %s313
        %p315 = pneg %p118
        %p316 = pneg %p115
        %p317 = scmp.lt.s32.totalorder %s31, 3
        %s318 = scalar_select %p317, %s31, 3
        %s319 = smul.addr %s318, 4
        %s320 = smul.addr %s319, 4
        %s321 = scalar_lea.vmem %s3, %s320
        %p322 = pneg %p144
        %p323 = pneg %p141
        %p324 = pneg %p174
        %p325 = pneg %p171
        %s326 = sand.u32 %s161, 1
        %s327 = scalar_lea.sflag [#allocation3], %s326
        %s328 = sand.u32 %s161, 1
        %s329 = smul.addr %s328, 4
        %s330 = scalar_lea.vmem [#allocation2], %s329
        %p331 = pneg %p204
        %p332 = pneg %p201
        %s333 = sand.u32 %s24, 1
        %s334 = scalar_lea.sflag [#allocation5], %s333
        %s335 = sand.u32 %s191, 1
        %s336 = smul.addr %s335, 4
        %s337 = scalar_lea.vmem [#allocation4], %s336
        %p338 = pneg %p234
        %p339 = pneg %p231
        %s340 = sand.u32 %s24, 1
        %s341 = scalar_lea.sflag [#allocation5], %s340
        %s342 = sand.u32 %s221, 1
        %s343 = smul.addr %s342, 4
        %s344 = scalar_lea.vmem [#allocation6], %s343
        %p345 = scmp.lt.s32.totalorder %s29, 1
        %s346 = scalar_select %p345, %s29, 1
        %p347 = scmp.lt.s32.totalorder %s30, 0
        %s348 = scalar_select %p347, %s30, 0
        %s349 = sadd.s32 %s348, %s346
        %s350 = smul.addr %s349, 4
        %s351 = scalar_lea.vmem %s0, %s350
        %p352 = scmp.lt.s32.totalorder %s31, 3
        %s353 = scalar_select %p352, %s31, 3
        %s354 = smul.addr %s353, 4
        %s355 = smul.addr %s354, 4
        %s356 = scalar_lea.vmem %s1, %s355
        %p357 = scmp.lt.s32.totalorder %s31, 3
        %s358 = scalar_select %p357, %s31, 3
        %s359 = smul.addr %s358, 4
        %s360 = smul.addr %s359, 4
        %s361 = scalar_lea.vmem %s2, %s360
        %p362 = scmp.lt.s32.totalorder %s31, 3
        %s363 = scalar_select %p362, %s31, 3
        %s364 = smul.addr %s363, 4
        %s365 = smul.addr %s364, 4
        %s366 = scalar_lea.vmem %s3, %s365
        %v368 = vld [vmem:[%s351] sm:$0xf]
        %v369 = vld [vmem:[%s356] sm:$0xf]
        %v370 = vld [vmem:[%s356 + $0x4] sm:$0xf]
        %v371 = vld [vmem:[%s356 + $0x8] sm:$0xf]
        %v372 = vld [vmem:[%s356 + $0xc] sm:$0xf]
        %v377 = vunpack.c.l.b16 %v369
        %v378 = vunpack.c.l.b16 %v370
        %v379 = vunpack.c.l.b16 %v371
        %v380 = vunpack.c.l.b16 %v372
        %v381 = vpack.c.b16 %v378, %v377
        %v382 = vpack.c.b16 %v380, %v379
        %vm385 = vcmask 261120
        %v387 = vsel %vm385, %v368, 0
        %389 = vmatprep.subr.bf16.mxu0 0
        %390 = vmatpush1.bf16.msra.mxu0 0
        %391 = vmatprep.subr.bf16.mxu0 0
        %392 = vmatpush1.bf16.msra.mxu0 0
        %393 = vmatprep.subr.bf16.mxu0 0
        %394 = vmatpush1.bf16.msra.mxu0 0
        %395 = vmatprep.subr.bf16.mxu0 0
        %396 = vmatpush1.bf16.msra.mxu0 0
        %397 = vmatprep.subr.bf16.mxu0 0
        %398 = vmatpush1.bf16.msra.mxu0 0
        %399 = vmatprep.subr.bf16.mxu0 0
        %400 = vmatpush1.bf16.msra.mxu0 0
        %401 = vmatprep.subr.bf16.mxu0 0
        %402 = vmatpush1.bf16.msra.mxu0 %v382
        %403 = vmatprep.subr.bf16.mxu0 0
        %404 = vmatpush1.bf16.msra.mxu0 %v381
        %405 = vmatprep.subr.bf16.mxu0 0
        %406 = vmatpush2.bf16.msra.mxu0 0
        %407 = vmatprep.subr.bf16.mxu0 0
        %408 = vmatpush2.bf16.msra.mxu0 0
        %409 = vmatprep.subr.bf16.mxu0 0
        %410 = vmatpush2.bf16.msra.mxu0 0
        %411 = vmatprep.subr.bf16.mxu0 0
        %412 = vmatpush2.bf16.msra.mxu0 0
        %413 = vmatprep.subr.bf16.mxu0 0
        %414 = vmatpush2.bf16.msra.mxu0 0
        %415 = vmatprep.subr.bf16.mxu0 0
        %416 = vmatpush2.bf16.msra.mxu0 0
        %417 = vmatprep.subr.bf16.mxu0 0
        %418 = vmatpush2.bf16.msra.mxu0 0
        %419 = vmatprep.subr.bf16.mxu0 0
        %420 = vmatpush2.bf16.msra.mxu0 0
        %421 = vmatprep.mubr.bf16.mxu0 0
        %422 = vmatmul.mubr.bf16.gmra.mxu0 %v387
        %v423 = vpop.f32.mrf.mxu0
        %v424 = vadd.f32 0.0, %v423
        %v425 = vpop.f32.mrf.mxu0
        %v426 = vpop.f32.mrf.mxu0
        %v427 = vpop.f32.mrf.mxu0
        %428 = vdwg.mxu0
        %v429 = vpack.c.bf16 %v424, %v424
        %vm430 = vcmask 125952
        %431 = vst.msk [vmem:[%s330] sm:$0xf] %vm430, %v429
        %v432 = vld [vmem:[%s361] sm:$0xf]
        %v433 = vld [vmem:[%s361 + $0x4] sm:$0xf]
        %v434 = vld [vmem:[%s361 + $0x8] sm:$0xf]
        %v435 = vld [vmem:[%s361 + $0xc] sm:$0xf]
        %v440 = vunpack.c.l.b16 %v432
        %v441 = vunpack.c.l.b16 %v433
        %v442 = vunpack.c.l.b16 %v434
        %v443 = vunpack.c.l.b16 %v435
        %v444 = vpack.c.b16 %v441, %v440
        %v445 = vpack.c.b16 %v443, %v442
        %448 = vmatprep.subr.bf16.mxu0 0
        %449 = vmatpush1.bf16.msra.mxu0 0
        %450 = vmatprep.subr.bf16.mxu0 0
        %451 = vmatpush1.bf16.msra.mxu0 0
        %452 = vmatprep.subr.bf16.mxu0 0
        %453 = vmatpush1.bf16.msra.mxu0 0
        %454 = vmatprep.subr.bf16.mxu0 0
        %455 = vmatpush1.bf16.msra.mxu0 0
        %456 = vmatprep.subr.bf16.mxu0 0
        %457 = vmatpush1.bf16.msra.mxu0 0
        %458 = vmatprep.subr.bf16.mxu0 0
        %459 = vmatpush1.bf16.msra.mxu0 0
        %460 = vmatprep.subr.bf16.mxu0 0
        %461 = vmatpush1.bf16.msra.mxu0 %v445
        %462 = vmatprep.subr.bf16.mxu0 0
        %463 = vmatpush1.bf16.msra.mxu0 %v444
        %464 = vmatprep.subr.bf16.mxu0 0
        %465 = vmatpush2.bf16.msra.mxu0 0
        %466 = vmatprep.subr.bf16.mxu0 0
        %467 = vmatpush2.bf16.msra.mxu0 0
        %468 = vmatprep.subr.bf16.mxu0 0
        %469 = vmatpush2.bf16.msra.mxu0 0
        %470 = vmatprep.subr.bf16.mxu0 0
        %471 = vmatpush2.bf16.msra.mxu0 0
        %472 = vmatprep.subr.bf16.mxu0 0
        %473 = vmatpush2.bf16.msra.mxu0 0
        %474 = vmatprep.subr.bf16.mxu0 0
        %475 = vmatpush2.bf16.msra.mxu0 0
        %476 = vmatprep.subr.bf16.mxu0 0
        %477 = vmatpush2.bf16.msra.mxu0 0
        %478 = vmatprep.subr.bf16.mxu0 0
        %479 = vmatpush2.bf16.msra.mxu0 0
        %480 = vmatprep.mubr.bf16.mxu0 0
        %481 = vmatmul.mubr.bf16.gmra.mxu0 %v387
        %v482 = vpop.f32.mrf.mxu0
        %v483 = vadd.f32 0.0, %v482
        %v484 = vpop.f32.mrf.mxu0
        %v485 = vpop.f32.mrf.mxu0
        %v486 = vpop.f32.mrf.mxu0
        %487 = vdwg.mxu0
        %v488 = vpack.c.bf16 %v483, %v483
        %489 = vst.msk [vmem:[%s337] sm:$0xf] %vm430, %v488
        %v490 = vld [vmem:[%s366] sm:$0xf]
        %v491 = vld [vmem:[%s366 + $0x4] sm:$0xf]
        %v492 = vld [vmem:[%s366 + $0x8] sm:$0xf]
        %v493 = vld [vmem:[%s366 + $0xc] sm:$0xf]
        %v498 = vunpack.c.l.b16 %v490
        %v499 = vunpack.c.l.b16 %v491
        %v500 = vunpack.c.l.b16 %v492
        %v501 = vunpack.c.l.b16 %v493
        %v502 = vpack.c.b16 %v499, %v498
        %v503 = vpack.c.b16 %v501, %v500
        %506 = vmatprep.subr.bf16.mxu0 0
        %507 = vmatpush1.bf16.msra.mxu0 0
        %508 = vmatprep.subr.bf16.mxu0 0
        %509 = vmatpush1.bf16.msra.mxu0 0
        %510 = vmatprep.subr.bf16.mxu0 0
        %511 = vmatpush1.bf16.msra.mxu0 0
        %512 = vmatprep.subr.bf16.mxu0 0
        %513 = vmatpush1.bf16.msra.mxu0 0
        %514 = vmatprep.subr.bf16.mxu0 0
        %515 = vmatpush1.bf16.msra.mxu0 0
        %516 = vmatprep.subr.bf16.mxu0 0
        %517 = vmatpush1.bf16.msra.mxu0 0
        %518 = vmatprep.subr.bf16.mxu0 0
        %519 = vmatpush1.bf16.msra.mxu0 %v503
        %520 = vmatprep.subr.bf16.mxu0 0
        %521 = vmatpush1.bf16.msra.mxu0 %v502
        %522 = vmatprep.subr.bf16.mxu0 0
        %523 = vmatpush2.bf16.msra.mxu0 0
        %524 = vmatprep.subr.bf16.mxu0 0
        %525 = vmatpush2.bf16.msra.mxu0 0
        %526 = vmatprep.subr.bf16.mxu0 0
        %527 = vmatpush2.bf16.msra.mxu0 0
        %528 = vmatprep.subr.bf16.mxu0 0
        %529 = vmatpush2.bf16.msra.mxu0 0
        %530 = vmatprep.subr.bf16.mxu0 0
        %531 = vmatpush2.bf16.msra.mxu0 0
        %532 = vmatprep.subr.bf16.mxu0 0
        %533 = vmatpush2.bf16.msra.mxu0 0
        %534 = vmatprep.subr.bf16.mxu0 0
        %535 = vmatpush2.bf16.msra.mxu0 0
        %536 = vmatprep.subr.bf16.mxu0 0
        %537 = vmatpush2.bf16.msra.mxu0 0
        %538 = vmatprep.mubr.bf16.mxu0 0
        %539 = vmatmul.mubr.bf16.gmra.mxu0 %v387
        %v540 = vpop.f32.mrf.mxu0
        %v541 = vadd.f32 0.0, %v540
        %v542 = vpop.f32.mrf.mxu0
        %v543 = vpop.f32.mrf.mxu0
        %v544 = vpop.f32.mrf.mxu0
        %545 = vdwg.mxu0
        %v546 = vpack.c.bf16 %v541, %v541
        %547 = vst.msk [vmem:[%s344] sm:$0xf] %vm430, %v546
        %s548 = sand.u32 %s161, 1
        %s549 = scalar_lea.sflag [#allocation3], %s548
        %s550 = sand.u32 %s161, 1
        %s551 = smul.addr %s550, 4
        %s552 = scalar_lea.vmem [#allocation2], %s551
        %s553 = sand.u32 %s24, 1
        %s554 = scalar_lea.sflag [#allocation5], %s553
        %s555 = sand.u32 %s191, 1
        %s556 = smul.addr %s555, 4
        %s557 = scalar_lea.vmem [#allocation4], %s556
        %s558 = sand.u32 %s24, 1
        %s559 = scalar_lea.sflag [#allocation5], %s558
        %s560 = sand.u32 %s221, 1
        %s561 = smul.addr %s560, 4
        %s562 = scalar_lea.vmem [#allocation6], %s561
        // Predicated region
        $region37: #{tpu_custom_call.1} parent=35 // pred_check
          %p563 = pneg %p171
        $region38: #{tpu_custom_call.1} parent=35 // pred_check_branch
          %565 = sbr.rel (%p563) target = $region40
        $region39: #{tpu_custom_call.1} parent=35 // pred_region
          %s567 = ssub.s32 64, 64
          %568 = vsyncadd %s549, %s567
          %s569 = sadd.s32 %s30, %s31
          %s570 = smul.addr %s29, 4
          %s571 = sadd.s32 %s569, %s570
          %s572 = smul.addr %s571, 64
          %s573 = scalar_lea.hbm %s4, %s572
          %s575 = sshll.u32 %s552, 4
          %s576 = int_to_ptr.vmem [resolvable:$true] %s575
          %578 = dma.vmem_to_hbm [thread:$0]  %s576, 64, %s573, %s549
        $region40: #{tpu_custom_call.1} parent=35 // pred_fallthru
          _
        // Predicated region
        $region41: #{tpu_custom_call.1} parent=35 // pred_check
          %p579 = pneg %p201
        $region42: #{tpu_custom_call.1} parent=35 // pred_check_branch
          %581 = sbr.rel (%p579) target = $region44
        $region43: #{tpu_custom_call.1} parent=35 // pred_region
          %s583 = ssub.s32 64, 64
          %584 = vsyncadd %s554, %s583
          %s585 = sadd.s32 %s30, %s31
          %s586 = smul.addr %s29, 4
          %s587 = sadd.s32 %s585, %s586
          %s588 = smul.addr %s587, 64
          %s589 = scalar_lea.hbm %s5, %s588
          %s591 = sshll.u32 %s557, 4
          %s592 = int_to_ptr.vmem [resolvable:$true] %s591
          %594 = dma.vmem_to_hbm [thread:$0]  %s592, 64, %s589, %s554
        $region44: #{tpu_custom_call.1} parent=35 // pred_fallthru
          _
        // Predicated region
        $region45: #{tpu_custom_call.1} parent=35 // pred_check
          %p595 = pneg %p231
        $region46: #{tpu_custom_call.1} parent=35 // pred_check_branch
          %597 = sbr.rel (%p595) target = $region48
        $region47: #{tpu_custom_call.1} parent=35 // pred_region
          %s599 = ssub.s32 64, 64
          %600 = vsyncadd %s559, %s599
          %s601 = sadd.s32 %s30, %s31
          %s602 = smul.addr %s29, 4
          %s603 = sadd.s32 %s601, %s602
          %s604 = smul.addr %s603, 64
          %s605 = scalar_lea.hbm %s6, %s604
          %s607 = sshll.u32 %s562, 4
          %s608 = int_to_ptr.vmem [resolvable:$true] %s607
          %610 = dma.vmem_to_hbm [thread:$0]  %s608, 64, %s605, %s559
        $region48: #{tpu_custom_call.1} parent=35 // pred_fallthru
          _
      $region36: #{tpu_custom_call.1} parent=5 // pred_fallthru
        _
      %p611 = scmp.le.s32.totalorder 2, %s19
      // Predicated region
      $region49: #{tpu_custom_call.1} parent=5 // pred_check
        %p612 = pneg %p611
      $region50: #{tpu_custom_call.1} parent=5 // pred_check_branch
        %614 = sbr.rel (%p612) target = $region52
      $region51: #{tpu_custom_call.1} parent=5 // pred_region
        %s615 = ssub.s32 %s19, 2
        // Predicated region
        $region53: #{tpu_custom_call.1} parent=51 // pred_check
          %p616 = pneg %p177
        $region54: #{tpu_custom_call.1} parent=51 // pred_check_branch
          %618 = sbr.rel (%p616) target = $region56
        $region55: #{tpu_custom_call.1} parent=51 // pred_region
          %s619 = sand.u32 %s162, 1
          %s620 = scalar_lea.sflag [#allocation3], %s619
          %s621 = sand.u32 %s162, 1
          %s622 = smul.addr %s621, 4
          %s623 = scalar_lea.vmem [#allocation2], %s622
          %624 = dma.done %s620, 64
        $region56: #{tpu_custom_call.1} parent=51 // pred_fallthru
          _
        // Predicated region
        $region57: #{tpu_custom_call.1} parent=51 // pred_check
          %p625 = pneg %p207
        $region58: #{tpu_custom_call.1} parent=51 // pred_check_branch
          %627 = sbr.rel (%p625) target = $region60
        $region59: #{tpu_custom_call.1} parent=51 // pred_region
          %s628 = sand.u32 %s25, 1
          %s629 = scalar_lea.sflag [#allocation5], %s628
          %s630 = sand.u32 %s192, 1
          %s631 = smul.addr %s630, 4
          %s632 = scalar_lea.vmem [#allocation4], %s631
          %633 = dma.done %s629, 64
        $region60: #{tpu_custom_call.1} parent=51 // pred_fallthru
          _
        // Predicated region
        $region61: #{tpu_custom_call.1} parent=51 // pred_check
          %p634 = pneg %p237
        $region62: #{tpu_custom_call.1} parent=51 // pred_check_branch
          %636 = sbr.rel (%p634) target = $region64
        $region63: #{tpu_custom_call.1} parent=51 // pred_region
          %s637 = sand.u32 %s25, 1
          %s638 = scalar_lea.sflag [#allocation5], %s637
          %s639 = sand.u32 %s222, 1
          %s640 = smul.addr %s639, 4
          %s641 = scalar_lea.vmem [#allocation6], %s640
          %642 = dma.done %s638, 64
        $region64: #{tpu_custom_call.1} parent=51 // pred_fallthru
          _
      $region52: #{tpu_custom_call.1} parent=5 // pred_fallthru
        _
    $region6: #{tpu_custom_call.1} parent=1 // loop_footer
      %s23 = sadd.s32 1, %s19
    $region7: #{tpu_custom_call.1} parent=1 // loop_footer_branch
      %18 = sbr.rel target = $region3
    $region8: #{tpu_custom_call.1} parent=1 // loop_exit
      _
    %643 = vsyncpa [#allocation3], 1
    %s644 = scalar_lea.sflag [#allocation3], 1
    %645 = vsyncpa %s644, 1
    %646 = vsyncpa [#allocation5], 1
    %s647 = scalar_lea.sflag [#allocation5], 1
    %648 = vsyncpa %s647, 1

</llo_original>
